<compile_context>
chip_gen: v6e
topology: v6e:2x2x1
jax: 0.10.0
libtpu: 0.0.40
codegen_flags: <defaults>
</compile_context>

<pallas_src>
import jax
import jax.numpy as jnp
from jax import lax
from jax.experimental import pallas as pl
from jax.experimental.pallas import tpu as pltpu


def _chain_kernel(x1_ref, x2_ref, x3_ref, out_ref):
    x1 = x1_ref[...]            # (Bt, N, N)
    x2 = x2_ref[...]            # (Bt, N, N)
    x3 = x3_ref[...]            # (Bt, N, N)

    # t = x3^T @ x1 : fold the transpose into the contraction (contract the
    # "row" dims of both operands) instead of materializing x3.T.
    t = lax.dot_general(
        x3, x1, (((1,), (1,)), ((0,), (0,))),
        preferred_element_type=jnp.float32)
    # out1 = t @ x2^T : contract the last dims of both operands.
    out1 = lax.dot_general(
        t, x2, (((2,), (2,)), ((0,), (0,))),
        preferred_element_type=jnp.float32)
    # out2 = out1 @ out1  (the returned value)
    out2 = lax.dot_general(
        out1, out1, (((2,), (1,)), ((0,), (0,))),
        preferred_element_type=jnp.float32)
    # out3 = (out2 @ out1) @ x2^T is dead code in the PyTorch module; skipped.
    # TODO(synk): out3 is never returned, so we do not materialize it.

    out_ref[...] = out2.astype(out_ref.dtype)


def _pick_block_b(B, N, itemsize, vmem_budget_bytes):
    """Batch elements per grid step.

    Per step we hold roughly 4 tensors (3 in + 1 out) x 2 pipeline buffers of
    (block_b, N, N). Keep >= 2 grid steps when B >= 2 so both v7x TensorCores
    get work under dimension_semantics=('parallel',).
    """
    per_batch = 4 * 2 * N * N * itemsize
    max_bb_vmem = max(1, vmem_budget_bytes // per_batch)
    target = max(1, B // 2) if B >= 2 else 1
    bb = max(1, min(target, max_bb_vmem, B))
    while B % bb != 0:          # keep every block full (no ragged last block)
        bb -= 1
    return bb


def model_forward(x1, x2, x3, *, block_b=None):
    B, N, _ = x1.shape
    if block_b is None:
        block_b = _pick_block_b(B, N, x1.dtype.itemsize,
                                vmem_budget_bytes=16 * 1024 * 1024)
    grid = (B // block_b,)
    spec = pl.BlockSpec((block_b, N, N), lambda b: (b, 0, 0))
    return pl.pallas_call(
        _chain_kernel,
        out_shape=jax.ShapeDtypeStruct((B, N, N), x1.dtype),
        grid=grid,
        in_specs=[spec, spec, spec],
        out_specs=spec,
        compiler_params=pltpu.CompilerParams(
            dimension_semantics=("parallel",),
            vmem_limit_bytes=32 * 1024 * 1024,
        ),
    )(x1, x2, x3)


def model_forward_ref(x1, x2, x3):
    x3t = jnp.swapaxes(x3, 1, 2)
    x2t = jnp.swapaxes(x2, 1, 2)
    out1 = jnp.matmul(jnp.matmul(x3t, x1), x2t)
    out2 = jnp.matmul(out1, out1)
    return out2


if __name__ == "__main__":
    B, N = 2, 128
    key = jax.random.PRNGKey(0)
    k1, k2, k3 = jax.random.split(key, 3)
    x1 = jax.random.normal(k1, (B, N, N), dtype=jnp.float32)
    x2 = jax.random.normal(k2, (B, N, N), dtype=jnp.float32)
    x3 = jax.random.normal(k3, (B, N, N), dtype=jnp.float32)

    out = model_forward(x1, x2, x3)
    jax.block_until_ready(out)

    ref = model_forward_ref(x1, x2, x3)
    assert out.shape == (B, N, N)
    assert jnp.allclose(out, ref, rtol=1e-4, atol=1e-3), "mismatch vs reference"

    print("KERNEL_OK")
</pallas_src>

<mosaic_0001>
module attributes {stable_mosaic.version = 11 : i64} {
  func.func @_chain_kernel(%arg0: i32, %arg1: memref<1x128x128xf32, #tpu.memory_space<vmem>>, %arg2: memref<1x128x128xf32, #tpu.memory_space<vmem>>, %arg3: memref<1x128x128xf32, #tpu.memory_space<vmem>>, %arg4: memref<1x128x128xf32, #tpu.memory_space<vmem>>) attributes {dimension_semantics = [#tpu.dimension_semantics<parallel>], iteration_bounds = array<i64: 2>, scalar_prefetch = 0 : i64, scratch_operands = 0 : i64, tpu.core_type = #tpu.core_type<tc>, window_params = [{transform_indices = @transform_0, window_bounds = array<i64: 1, 128, 128>}, {transform_indices = @transform_1, window_bounds = array<i64: 1, 128, 128>}, {transform_indices = @transform_2, window_bounds = array<i64: 1, 128, 128>}, {transform_indices = @transform_3, window_bounds = array<i64: 1, 128, 128>}]} {
    %c0 = arith.constant 0 : index
    %c0_0 = arith.constant 0 : index
    %c0_1 = arith.constant 0 : index
    %0 = vector.load %arg1[%c0, %c0_0, %c0_1] : memref<1x128x128xf32, #tpu.memory_space<vmem>>, vector<1x128x128xf32>
    %c0_2 = arith.constant 0 : index
    %c0_3 = arith.constant 0 : index
    %c0_4 = arith.constant 0 : index
    %1 = vector.load %arg2[%c0_2, %c0_3, %c0_4] : memref<1x128x128xf32, #tpu.memory_space<vmem>>, vector<1x128x128xf32>
    %c0_5 = arith.constant 0 : index
    %c0_6 = arith.constant 0 : index
    %c0_7 = arith.constant 0 : index
    %2 = vector.load %arg3[%c0_5, %c0_6, %c0_7] : memref<1x128x128xf32, #tpu.memory_space<vmem>>, vector<1x128x128xf32>
    %cst = arith.constant dense<0.000000e+00> : vector<1x128x128xf32>
    %3 = tpu.matmul %2, %0, %cst {dimension_numbers = #tpu.dot_dimension_numbers<[1], [1], [2], [2], [0, 0, 0, 2, 1, 2], [0], [0]>} : vector<1x128x128xf32>, vector<1x128x128xf32>, vector<1x128x128xf32> -> vector<1x128x128xf32>
    %cst_8 = arith.constant dense<0.000000e+00> : vector<1x128x128xf32>
    %4 = tpu.matmul %3, %1, %cst_8 {dimension_numbers = #tpu.dot_dimension_numbers<[2], [2], [1], [1], [0, 0, 0, 1, 1, 1], [0], [0]>} : vector<1x128x128xf32>, vector<1x128x128xf32>, vector<1x128x128xf32> -> vector<1x128x128xf32>
    %cst_9 = arith.constant dense<0.000000e+00> : vector<1x128x128xf32>
    %5 = tpu.matmul %4, %4, %cst_9 {dimension_numbers = #tpu.dot_dimension_numbers<[2], [1], [1], [2], [0, 0, 0, 1, 1, 2], [0], [0]>} : vector<1x128x128xf32>, vector<1x128x128xf32>, vector<1x128x128xf32> -> vector<1x128x128xf32>
    %c0_10 = arith.constant 0 : index
    %c0_11 = arith.constant 0 : index
    %c0_12 = arith.constant 0 : index
    %6 = vector.load %arg4[%c0_10, %c0_11, %c0_12] : memref<1x128x128xf32, #tpu.memory_space<vmem>>, vector<1x128x128xf32>
    tpu.vector_store %arg4[%c0_10, %c0_11, %c0_12], %5 {strides = array<i32>} : memref<1x128x128xf32, #tpu.memory_space<vmem>>, vector<1x128x128xf32>,
    return
  }
  func.func @transform_0(%arg0: i32) -> (i32, i32, i32) {
    %c0_i32 = arith.constant 0 : i32
    %c0_i32_0 = arith.constant 0 : i32
    %c0_i32_1 = arith.constant 0 : i32
    return %arg0, %c0_i32, %c0_i32_0 : i32, i32, i32
  }
  func.func @transform_1(%arg0: i32) -> (i32, i32, i32) {
    %c0_i32 = arith.constant 0 : i32
    %c0_i32_0 = arith.constant 0 : i32
    %c0_i32_1 = arith.constant 0 : i32
    return %arg0, %c0_i32, %c0_i32_0 : i32, i32, i32
  }
  func.func @transform_2(%arg0: i32) -> (i32, i32, i32) {
    %c0_i32 = arith.constant 0 : i32
    %c0_i32_0 = arith.constant 0 : i32
    %c0_i32_1 = arith.constant 0 : i32
    return %arg0, %c0_i32, %c0_i32_0 : i32, i32, i32
  }
  func.func @transform_3(%arg0: i32) -> (i32, i32, i32) {
    %c0_i32 = arith.constant 0 : i32
    %c0_i32_0 = arith.constant 0 : i32
    %c0_i32_1 = arith.constant 0 : i32
    return %arg0, %c0_i32, %c0_i32_0 : i32, i32, i32
  }
}

</mosaic_0001>

<llo_original>
// kernel: tpu_custom_call.1
$region0: #{tpu_custom_call.1}
  #allocation0 [shape = 'u32[]', space=smem, size = 0x4, offset = 0x4, fixed_abs, tag = 'smem constant byte address 0x4 - core index']
  #allocation1 [shape = 'u32[144,128]{1,0:T(1,128)}', space=vmem, size = 0x12000, scoped, tag = 'internal scratch']
  %s0 = inlined_call_operand.hbm [shape: f32[2,128,128], index: 0, kind: input, shape index: {}]
  %s1 = inlined_call_operand.hbm [shape: f32[2,128,128], index: 1, kind: input, shape index: {}]
  %s2 = inlined_call_operand.hbm [shape: f32[2,128,128], index: 2, kind: input, shape index: {}]
  %s3 = inlined_call_operand.hbm [shape: f32[2,128,128], index: 3, kind: output, shape index: {}]
  %s4 = sld [smem:[#allocation0]]
  $region57: #{tpu_custom_call.1} parent=0
    _
  %s6 = ssub.s32 1, %s4
  %s7 = scalar_select 0, %s6, %s4
  $region1: #{tpu_custom_call.1} parent=0
    #allocation2 [shape = 'u8[131072]{0}', space=vmem, size = 0x20000, scoped, tag = 'input window, operand 0']
    #allocation3 [shape = 's32[2]{0}', space=sflag, size = 0x8, scoped, tag = 'scoped memory for tpu_custom_call.1']
    #allocation4 [shape = 's32[2]{0}', space=sflag, size = 0x8, scoped, tag = 'scoped memory for tpu_custom_call.1']
    #allocation5 [shape = 'u8[131072]{0}', space=vmem, size = 0x20000, scoped, tag = 'input window, operand 1']
    #allocation6 [shape = 's32[2]{0}', space=sflag, size = 0x8, scoped, tag = 'scoped memory for tpu_custom_call.1']
    #allocation7 [shape = 'u8[131072]{0}', space=vmem, size = 0x20000, scoped, tag = 'input window, operand 2']
    #allocation8 [shape = 'u8[131072]{0}', space=vmem, size = 0x20000, scoped, tag = 'output window, operand 0']
    %8 = vsyncpa [#allocation3], 0
    %s9 = scalar_lea.sflag [#allocation3], 1
    %10 = vsyncpa %s9, 0
    %11 = vsyncpa [#allocation6], 0
    %s12 = scalar_lea.sflag [#allocation6], 1
    %13 = vsyncpa %s12, 0
    %14 = vsyncpa [#allocation4], 0
    %s15 = scalar_lea.sflag [#allocation4], 1
    %16 = vsyncpa %s15, 0
    loop: start=0, step=1, limit=4
    $region2: #{tpu_custom_call.1} parent=1 // loop_pre_header
      _
    $region3: #{tpu_custom_call.1} parent=1 // loop_header
      %s18 = sphi 0, %s22
      %p19 = scmp.ge.s32.totalorder %s18, 4
      %s28 = sphi 0, %s30
      %s31 = sphi 0, %s28
      %s32 = sphi 0, %s31
      %s48 = sphi 0, %s32
      %s54 = sphi 0, %s56
      %s57 = sphi 0, %s54
      %s58 = sphi 0, %s57
      %s74 = sphi 0, %s58
      %s80 = sphi 0, %s82
      %s83 = sphi 0, %s80
      %s84 = sphi 0, %s83
      %s100 = sphi 0, %s84
      %s106 = sphi 0, %s108
      %s109 = sphi 0, %s106
      %s110 = sphi 0, %s109
      %s126 = sphi 0, %s110
    $region4: #{tpu_custom_call.1} parent=1 // loop_header_branch
      %21 = sbr.rel (%p19) target = $region8
    $region5: #{tpu_custom_call.1} parent=1 // loop_body
      %s23 = ssub.s32 %s18, 1
      %s24 = ssub.s32 %s18, 2
      %s25 = sadd.s32 %s18, 1
      %s26 = ssub.s32 %s18, %s25
      %p27 = scmp.eq.s32.totalorder %s26, 0
      %s29 = sadd.s32 %s28, 1
      %s30 = scalar_select %p27, %s28, %s29
      %p33 = pneg %p27
      %p34 = scmp.eq.s32.totalorder %s18, 1
      %p35 = por %p33, %p34
      %p36 = scmp.ne.s32.totalorder %s28, %s31
      %p37 = scmp.eq.s32.totalorder %s18, 0
      %p38 = por %p36, %p37
      %p39 = scmp.ne.s32.totalorder %s28, %s31
      %p40 = scmp.eq.s32.totalorder %s23, 1
      %p41 = por %p39, %p40
      %p42 = scmp.ne.s32.totalorder %s31, %s32
      %p43 = scmp.eq.s32.totalorder %s23, 0
      %p44 = por %p42, %p43
      %p45 = scmp.ne.s32.totalorder %s31, %s32
      %p46 = scmp.eq.s32.totalorder %s24, 1
      %p47 = por %p45, %p46
      %p49 = scmp.ne.s32.totalorder %s32, %s48
      %p50 = scmp.eq.s32.totalorder %s24, 0
      %p51 = por %p49, %p50
      %s52 = ssub.s32 %s18, %s25
      %p53 = scmp.eq.s32.totalorder %s52, 0
      %s55 = sadd.s32 %s54, 1
      %s56 = scalar_select %p53, %s54, %s55
      %p59 = pneg %p53
      %p60 = scmp.eq.s32.totalorder %s18, 1
      %p61 = por %p59, %p60
      %p62 = scmp.ne.s32.totalorder %s54, %s57
      %p63 = scmp.eq.s32.totalorder %s18, 0
      %p64 = por %p62, %p63
      %p65 = scmp.ne.s32.totalorder %s54, %s57
      %p66 = scmp.eq.s32.totalorder %s23, 1
      %p67 = por %p65, %p66
      %p68 = scmp.ne.s32.totalorder %s57, %s58
      %p69 = scmp.eq.s32.totalorder %s23, 0
      %p70 = por %p68, %p69
      %p71 = scmp.ne.s32.totalorder %s57, %s58
      %p72 = scmp.eq.s32.totalorder %s24, 1
      %p73 = por %p71, %p72
      %p75 = scmp.ne.s32.totalorder %s58, %s74
      %p76 = scmp.eq.s32.totalorder %s24, 0
      %p77 = por %p75, %p76
      %s78 = ssub.s32 %s18, %s25
      %p79 = scmp.eq.s32.totalorder %s78, 0
      %s81 = sadd.s32 %s80, 1
      %s82 = scalar_select %p79, %s80, %s81
      %p85 = pneg %p79
      %p86 = scmp.eq.s32.totalorder %s18, 1
      %p87 = por %p85, %p86
      %p88 = scmp.ne.s32.totalorder %s80, %s83
      %p89 = scmp.eq.s32.totalorder %s18, 0
      %p90 = por %p88, %p89
      %p91 = scmp.ne.s32.totalorder %s80, %s83
      %p92 = scmp.eq.s32.totalorder %s23, 1
      %p93 = por %p91, %p92
      %p94 = scmp.ne.s32.totalorder %s83, %s84
      %p95 = scmp.eq.s32.totalorder %s23, 0
      %p96 = por %p94, %p95
      %p97 = scmp.ne.s32.totalorder %s83, %s84
      %p98 = scmp.eq.s32.totalorder %s24, 1
      %p99 = por %p97, %p98
      %p101 = scmp.ne.s32.totalorder %s84, %s100
      %p102 = scmp.eq.s32.totalorder %s24, 0
      %p103 = por %p101, %p102
      %s104 = ssub.s32 %s18, %s25
      %p105 = scmp.eq.s32.totalorder %s104, 0
      %s107 = sadd.s32 %s106, 1
      %s108 = scalar_select %p105, %s106, %s107
      %p111 = pneg %p105
      %p112 = scmp.eq.s32.totalorder %s18, 1
      %p113 = por %p111, %p112
      %p114 = scmp.ne.s32.totalorder %s106, %s109
      %p115 = scmp.eq.s32.totalorder %s18, 0
      %p116 = por %p114, %p115
      %p117 = scmp.ne.s32.totalorder %s106, %s109
      %p118 = scmp.eq.s32.totalorder %s23, 1
      %p119 = por %p117, %p118
      %p120 = scmp.ne.s32.totalorder %s109, %s110
      %p121 = scmp.eq.s32.totalorder %s23, 0
      %p122 = por %p120, %p121
      %p123 = scmp.ne.s32.totalorder %s109, %s110
      %p124 = scmp.eq.s32.totalorder %s24, 1
      %p125 = por %p123, %p124
      %p127 = scmp.ne.s32.totalorder %s110, %s126
      %p128 = scmp.eq.s32.totalorder %s24, 0
      %p129 = por %p127, %p128
      %p130 = scmp.le.s32.totalorder 1, %s18
      %p131 = scmp.lt.s32.totalorder %s18, 3
      %p132 = pnand %p130, %p131
      %p133 = pneg %p132
      // Predicated region
      $region9: #{tpu_custom_call.1} parent=5 // pred_check
        _
      $region10: #{tpu_custom_call.1} parent=5 // pred_check_branch
        %135 = sbr.rel (%p132) target = $region12
      $region11: #{tpu_custom_call.1} parent=5 // pred_region
        %s136 = ssub.s32 %s18, 1
      $region12: #{tpu_custom_call.1} parent=5 // pred_fallthru
        _
      %p137 = scmp.lt.s32.totalorder %s18, 2
      // Predicated region
      $region13: #{tpu_custom_call.1} parent=5 // pred_check
        %p138 = pneg %p137
      $region14: #{tpu_custom_call.1} parent=5 // pred_check_branch
        %140 = sbr.rel (%p138) target = $region16
      $region15: #{tpu_custom_call.1} parent=5 // pred_region
        // Predicated region
        $region17: #{tpu_custom_call.1} parent=15 // pred_check
          %p141 = pneg %p38
        $region18: #{tpu_custom_call.1} parent=15 // pred_check_branch
          %143 = sbr.rel (%p141) target = $region20
        $region19: #{tpu_custom_call.1} parent=15 // pred_region
          %s144 = sand.u32 %s28, 1
          %s145 = scalar_lea.sflag [#allocation3], %s144
          %s146 = sand.u32 %s28, 1
          %s147 = smul.addr %s146, 128
          %s148 = scalar_lea.vmem [#allocation2], %s147
          %s150 = ssub.s32 2048, 2048
          %151 = vsyncadd %s145, %s150
          %s152 = smul.addr %s18, 16
          %s153 = smul.addr %s152, 128
          %s154 = scalar_lea.hbm %s0, %s153
          %s155 = sshll.u32 %s148, 4
          %s156 = int_to_ptr.vmem [resolvable:$true] %s155
          %161 = dma.hbm_to_vmem [thread:$0]  %s154, 2048, %s156, %s145, 128, 128, 8
        $region20: #{tpu_custom_call.1} parent=15 // pred_fallthru
          _
        // Predicated region
        $region21: #{tpu_custom_call.1} parent=15 // pred_check
          %p162 = pneg %p64
        $region22: #{tpu_custom_call.1} parent=15 // pred_check_branch
          %164 = sbr.rel (%p162) target = $region24
        $region23: #{tpu_custom_call.1} parent=15 // pred_region
          %s165 = sand.u32 %s18, 1
          %s166 = scalar_lea.sflag [#allocation6], %s165
          %s167 = sand.u32 %s54, 1
          %s168 = smul.addr %s167, 128
          %s169 = scalar_lea.vmem [#allocation5], %s168
          %s171 = ssub.s32 2048, 2048
          %172 = vsyncadd %s166, %s171
          %s173 = smul.addr %s18, 16
          %s174 = smul.addr %s173, 128
          %s175 = scalar_lea.hbm %s1, %s174
          %s176 = sshll.u32 %s169, 4
          %s177 = int_to_ptr.vmem [resolvable:$true] %s176
          %182 = dma.hbm_to_vmem [thread:$0]  %s175, 2048, %s177, %s166, 128, 128, 8
        $region24: #{tpu_custom_call.1} parent=15 // pred_fallthru
          _
        // Predicated region
        $region25: #{tpu_custom_call.1} parent=15 // pred_check
          %p183 = pneg %p90
        $region26: #{tpu_custom_call.1} parent=15 // pred_check_branch
          %185 = sbr.rel (%p183) target = $region28
        $region27: #{tpu_custom_call.1} parent=15 // pred_region
          %s186 = sand.u32 %s18, 1
          %s187 = scalar_lea.sflag [#allocation6], %s186
          %s188 = sand.u32 %s80, 1
          %s189 = smul.addr %s188, 128
          %s190 = scalar_lea.vmem [#allocation7], %s189
          %s192 = ssub.s32 2048, 2048
          %193 = vsyncadd %s187, %s192
          %s194 = smul.addr %s18, 16
          %s195 = smul.addr %s194, 128
          %s196 = scalar_lea.hbm %s2, %s195
          %s197 = sshll.u32 %s190, 4
          %s198 = int_to_ptr.vmem [resolvable:$true] %s197
          %203 = dma.hbm_to_vmem [thread:$0]  %s196, 2048, %s198, %s187, 128, 128, 8
        $region28: #{tpu_custom_call.1} parent=15 // pred_fallthru
          _
      $region16: #{tpu_custom_call.1} parent=5 // pred_fallthru
        _
      %p204 = scmp.le.s32.totalorder 1, %s18
      %p205 = scmp.lt.s32.totalorder %s18, 3
      %p206 = pnand %p204, %p205
      %p207 = pneg %p206
      // Predicated region
      $region29: #{tpu_custom_call.1} parent=5 // pred_check
        _
      $region30: #{tpu_custom_call.1} parent=5 // pred_check_branch
        %209 = sbr.rel (%p206) target = $region32
      $region31: #{tpu_custom_call.1} parent=5 // pred_region
        %s210 = ssub.s32 %s18, 1
        %s211 = sand.u32 %s31, 1
        %s212 = scalar_lea.sflag [#allocation3], %s211
        %s213 = sand.u32 %s31, 1
        %s214 = smul.addr %s213, 128
        %s215 = scalar_lea.vmem [#allocation2], %s214
        // Predicated region
        $region33: #{tpu_custom_call.1} parent=31 // pred_check
          %p216 = pneg %p44
        $region34: #{tpu_custom_call.1} parent=31 // pred_check_branch
          %218 = sbr.rel (%p216) target = $region36
        $region35: #{tpu_custom_call.1} parent=31 // pred_region
          %219 = dma.done %s212, 2048
        $region36: #{tpu_custom_call.1} parent=31 // pred_fallthru
          _
        %s220 = sand.u32 %s23, 1
        %s221 = scalar_lea.sflag [#allocation6], %s220
        %s222 = sand.u32 %s57, 1
        %s223 = smul.addr %s222, 128
        %s224 = scalar_lea.vmem [#allocation5], %s223
        // Predicated region
        $region37: #{tpu_custom_call.1} parent=31 // pred_check
          %p225 = pneg %p70
        $region38: #{tpu_custom_call.1} parent=31 // pred_check_branch
          %227 = sbr.rel (%p225) target = $region40
        $region39: #{tpu_custom_call.1} parent=31 // pred_region
          %228 = dma.done %s221, 2048
        $region40: #{tpu_custom_call.1} parent=31 // pred_fallthru
          _
        %s229 = sand.u32 %s23, 1
        %s230 = scalar_lea.sflag [#allocation6], %s229
        %s231 = sand.u32 %s83, 1
        %s232 = smul.addr %s231, 128
        %s233 = scalar_lea.vmem [#allocation7], %s232
        // Predicated region
        $region41: #{tpu_custom_call.1} parent=31 // pred_check
          %p234 = pneg %p96
        $region42: #{tpu_custom_call.1} parent=31 // pred_check_branch
          %236 = sbr.rel (%p234) target = $region44
        $region43: #{tpu_custom_call.1} parent=31 // pred_region
          %237 = dma.done %s230, 2048
        $region44: #{tpu_custom_call.1} parent=31 // pred_fallthru
          _
        %s238 = sand.u32 %s31, 1
        %s239 = scalar_lea.sflag [#allocation3], %s238
        %s240 = sand.u32 %s31, 1
        %s241 = smul.addr %s240, 128
        %s242 = scalar_lea.vmem [#allocation2], %s241
        %p243 = pneg %p44
        %p244 = pneg %p41
        %s245 = sand.u32 %s23, 1
        %s246 = scalar_lea.sflag [#allocation6], %s245
        %s247 = sand.u32 %s57, 1
        %s248 = smul.addr %s247, 128
        %s249 = scalar_lea.vmem [#allocation5], %s248
        %p250 = pneg %p70
        %p251 = pneg %p67
        %s252 = sand.u32 %s23, 1
        %s253 = scalar_lea.sflag [#allocation6], %s252
        %s254 = sand.u32 %s83, 1
        %s255 = smul.addr %s254, 128
        %s256 = scalar_lea.vmem [#allocation7], %s255
        %p257 = pneg %p96
        %p258 = pneg %p93
        %p259 = pneg %p122
        %p260 = pneg %p119
        %s261 = sand.u32 %s109, 1
        %s262 = scalar_lea.sflag [#allocation4], %s261
        %s263 = sand.u32 %s109, 1
        %s264 = smul.addr %s263, 128
        %s265 = scalar_lea.vmem [#allocation8], %s264
        %v266 = vld [vmem:[%s215] sm:$0xff]
        %v267 = vld [vmem:[%s215 + $0x8] sm:$0xff]
        %v268 = vld [vmem:[%s215 + $0x10] sm:$0xff]
        %v269 = vld [vmem:[%s215 + $0x18] sm:$0xff]
        %v270 = vld [vmem:[%s215 + $0x20] sm:$0xff]
        %v271 = vld [vmem:[%s215 + $0x28] sm:$0xff]
        %v272 = vld [vmem:[%s215 + $0x30] sm:$0xff]
        %v273 = vld [vmem:[%s215 + $0x38] sm:$0xff]
        %v274 = vld [vmem:[%s215 + $0x40] sm:$0xff]
        %v275 = vld [vmem:[%s215 + $0x48] sm:$0xff]
        %v276 = vld [vmem:[%s215 + $0x50] sm:$0xff]
        %v277 = vld [vmem:[%s215 + $0x58] sm:$0xff]
        %v278 = vld [vmem:[%s215 + $0x60] sm:$0xff]
        %v279 = vld [vmem:[%s215 + $0x68] sm:$0xff]
        %v280 = vld [vmem:[%s215 + $0x70] sm:$0xff]
        %v281 = vld [vmem:[%s215 + $0x78] sm:$0xff]
        %v282 = vld [vmem:[%s224] sm:$0xff]
        %v283 = vld [vmem:[%s224 + $0x8] sm:$0xff]
        %v284 = vld [vmem:[%s224 + $0x10] sm:$0xff]
        %v285 = vld [vmem:[%s224 + $0x18] sm:$0xff]
        %v286 = vld [vmem:[%s224 + $0x20] sm:$0xff]
        %v287 = vld [vmem:[%s224 + $0x28] sm:$0xff]
        %v288 = vld [vmem:[%s224 + $0x30] sm:$0xff]
        %v289 = vld [vmem:[%s224 + $0x38] sm:$0xff]
        %v290 = vld [vmem:[%s224 + $0x40] sm:$0xff]
        %v291 = vld [vmem:[%s224 + $0x48] sm:$0xff]
        %v292 = vld [vmem:[%s224 + $0x50] sm:$0xff]
        %v293 = vld [vmem:[%s224 + $0x58] sm:$0xff]
        %v294 = vld [vmem:[%s224 + $0x60] sm:$0xff]
        %v295 = vld [vmem:[%s224 + $0x68] sm:$0xff]
        %v296 = vld [vmem:[%s224 + $0x70] sm:$0xff]
        %v297 = vld [vmem:[%s224 + $0x78] sm:$0xff]
        %v298 = vld [vmem:[%s233] sm:$0xff]
        %v299 = vld [vmem:[%s233 + $0x8] sm:$0xff]
        %v300 = vld [vmem:[%s233 + $0x10] sm:$0xff]
        %v301 = vld [vmem:[%s233 + $0x18] sm:$0xff]
        %v302 = vld [vmem:[%s233 + $0x20] sm:$0xff]
        %v303 = vld [vmem:[%s233 + $0x28] sm:$0xff]
        %v304 = vld [vmem:[%s233 + $0x30] sm:$0xff]
        %v305 = vld [vmem:[%s233 + $0x38] sm:$0xff]
        %v306 = vld [vmem:[%s233 + $0x40] sm:$0xff]
        %v307 = vld [vmem:[%s233 + $0x48] sm:$0xff]
        %v308 = vld [vmem:[%s233 + $0x50] sm:$0xff]
        %v309 = vld [vmem:[%s233 + $0x58] sm:$0xff]
        %v310 = vld [vmem:[%s233 + $0x60] sm:$0xff]
        %v311 = vld [vmem:[%s233 + $0x68] sm:$0xff]
        %v312 = vld [vmem:[%s233 + $0x70] sm:$0xff]
        %v313 = vld [vmem:[%s233 + $0x78] sm:$0xff]
        %314 = vxpose.xlu0.b32.start [1/16] %v298, 128
        %315 = vxpose.xlu0.b32.cont [2/16] %v299, 128
        %316 = vxpose.xlu0.b32.cont [3/16] %v300, 128
        %317 = vxpose.xlu0.b32.cont [4/16] %v301, 128
        %318 = vxpose.xlu0.b32.cont [5/16] %v302, 128
        %319 = vxpose.xlu0.b32.cont [6/16] %v303, 128
        %320 = vxpose.xlu0.b32.cont [7/16] %v304, 128
        %321 = vxpose.xlu0.b32.cont [8/16] %v305, 128
        %322 = vxpose.xlu0.b32.cont [9/16] %v306, 128
        %323 = vxpose.xlu0.b32.cont [10/16] %v307, 128
        %324 = vxpose.xlu0.b32.cont [11/16] %v308, 128
        %325 = vxpose.xlu0.b32.cont [12/16] %v309, 128
        %326 = vxpose.xlu0.b32.cont [13/16] %v310, 128
        %327 = vxpose.xlu0.b32.cont [14/16] %v311, 128
        %328 = vxpose.xlu0.b32.cont [15/16] %v312, 128
        %329 = vxpose.xlu0.b32.end [16/16] %v313, 128
        %v330 = vpop.trf.xlu0
        %v331 = vpop.trf.xlu0
        %v332 = vpop.trf.xlu0
        %v333 = vpop.trf.xlu0
        %v334 = vpop.trf.xlu0
        %v335 = vpop.trf.xlu0
        %v336 = vpop.trf.xlu0
        %v337 = vpop.trf.xlu0
        %v338 = vpop.trf.xlu0
        %v339 = vpop.trf.xlu0
        %v340 = vpop.trf.xlu0
        %v341 = vpop.trf.xlu0
        %v342 = vpop.trf.xlu0
        %v343 = vpop.trf.xlu0
        %v344 = vpop.trf.xlu0
        %v345 = vpop.trf.xlu0
        %346 = vmatprep.subr.mxu0 0.0
        %347 = vmatpush1.msra.mxu0 %v281
        %348 = vmatprep.subr.mxu0 0.0
        %349 = vmatpush1.msra.mxu0 %v280
        %350 = vmatprep.subr.mxu0 0.0
        %351 = vmatpush1.msra.mxu0 %v279
        %352 = vmatprep.subr.mxu0 0.0
        %353 = vmatpush1.msra.mxu0 %v278
        %354 = vmatprep.subr.mxu0 0.0
        %355 = vmatpush1.msra.mxu0 %v277
        %356 = vmatprep.subr.mxu0 0.0
        %357 = vmatpush1.msra.mxu0 %v276
        %358 = vmatprep.subr.mxu0 0.0
        %359 = vmatpush1.msra.mxu0 %v275
        %360 = vmatprep.subr.mxu0 0.0
        %361 = vmatpush1.msra.mxu0 %v274
        %362 = vmatprep.subr.mxu0 0.0
        %363 = vmatpush1.msra.mxu0 %v273
        %364 = vmatprep.subr.mxu0 0.0
        %365 = vmatpush1.msra.mxu0 %v272
        %366 = vmatprep.subr.mxu0 0.0
        %367 = vmatpush1.msra.mxu0 %v271
        %368 = vmatprep.subr.mxu0 0.0
        %369 = vmatpush1.msra.mxu0 %v270
        %370 = vmatprep.subr.mxu0 0.0
        %371 = vmatpush1.msra.mxu0 %v269
        %372 = vmatprep.subr.mxu0 0.0
        %373 = vmatpush1.msra.mxu0 %v268
        %374 = vmatprep.subr.mxu0 0.0
        %375 = vmatpush1.msra.mxu0 %v267
        %376 = vmatprep.subr.mxu0 0.0
        %377 = vmatpush1.msra.mxu0 %v266
        %378 = vmatprep.subr.mxu0 0.0
        %379 = vmatpush2.msra.mxu0 0.0
        %380 = vmatprep.subr.mxu0 0.0
        %381 = vmatpush2.msra.mxu0 0.0
        %382 = vmatprep.subr.mxu0 0.0
        %383 = vmatpush2.msra.mxu0 0.0
        %384 = vmatprep.subr.mxu0 0.0
        %385 = vmatpush2.msra.mxu0 0.0
        %386 = vmatprep.subr.mxu0 0.0
        %387 = vmatpush2.msra.mxu0 0.0
        %388 = vmatprep.subr.mxu0 0.0
        %389 = vmatpush2.msra.mxu0 0.0
        %390 = vmatprep.subr.mxu0 0.0
        %391 = vmatpush2.msra.mxu0 0.0
        %392 = vmatprep.subr.mxu0 0.0
        %393 = vmatpush2.msra.mxu0 0.0
        %394 = vmatprep.subr.mxu0 0.0
        %395 = vmatpush2.msra.mxu0 0.0
        %396 = vmatprep.subr.mxu0 0.0
        %397 = vmatpush2.msra.mxu0 0.0
        %398 = vmatprep.subr.mxu0 0.0
        %399 = vmatpush2.msra.mxu0 0.0
        %400 = vmatprep.subr.mxu0 0.0
        %401 = vmatpush2.msra.mxu0 0.0
        %402 = vmatprep.subr.mxu0 0.0
        %403 = vmatpush2.msra.mxu0 0.0
        %404 = vmatprep.subr.mxu0 0.0
        %405 = vmatpush2.msra.mxu0 0.0
        %406 = vmatprep.subr.mxu0 0.0
        %407 = vmatpush2.msra.mxu0 0.0
        %408 = vmatprep.subr.mxu0 0.0
        %409 = vmatpush2.msra.mxu0 0.0
        %410 = vmatprep.mubr.f32.mxu0 0.0
        %411 = vmatmul.mubr.f32.gmra.mxu0 %v330
        %v412 = vpop.f32.mrf.mxu0
        %v413 = vadd.f32 0.0, %v412
        %v414 = vpop.f32.mrf.mxu0
        %415 = vmatprep.mubr.f32.mxu0 0.0
        %416 = vmatmul.mubr.f32.gmra.mxu0 %v331
        %v417 = vpop.f32.mrf.mxu0
        %v418 = vadd.f32 0.0, %v417
        %v419 = vpop.f32.mrf.mxu0
        %420 = vmatprep.mubr.f32.mxu0 0.0
        %421 = vmatmul.mubr.f32.gmra.mxu0 %v332
        %v422 = vpop.f32.mrf.mxu0
        %v423 = vadd.f32 0.0, %v422
        %v424 = vpop.f32.mrf.mxu0
        %425 = vmatprep.mubr.f32.mxu0 0.0
        %426 = vmatmul.mubr.f32.gmra.mxu0 %v333
        %v427 = vpop.f32.mrf.mxu0
        %v428 = vadd.f32 0.0, %v427
        %v429 = vpop.f32.mrf.mxu0
        %430 = vmatprep.mubr.f32.mxu0 0.0
        %431 = vmatmul.mubr.f32.gmra.mxu0 %v334
        %v432 = vpop.f32.mrf.mxu0
        %v433 = vadd.f32 0.0, %v432
        %v434 = vpop.f32.mrf.mxu0
        %435 = vmatprep.mubr.f32.mxu0 0.0
        %436 = vmatmul.mubr.f32.gmra.mxu0 %v335
        %v437 = vpop.f32.mrf.mxu0
        %v438 = vadd.f32 0.0, %v437
        %v439 = vpop.f32.mrf.mxu0
        %440 = vmatprep.mubr.f32.mxu0 0.0
        %441 = vmatmul.mubr.f32.gmra.mxu0 %v336
        %v442 = vpop.f32.mrf.mxu0
        %v443 = vadd.f32 0.0, %v442
        %v444 = vpop.f32.mrf.mxu0
        %445 = vmatprep.mubr.f32.mxu0 0.0
        %446 = vmatmul.mubr.f32.gmra.mxu0 %v337
        %v447 = vpop.f32.mrf.mxu0
        %v448 = vadd.f32 0.0, %v447
        %v449 = vpop.f32.mrf.mxu0
        %450 = vmatprep.mubr.f32.mxu0 0.0
        %451 = vmatmul.mubr.f32.gmra.mxu0 %v338
        %v452 = vpop.f32.mrf.mxu0
        %v453 = vadd.f32 0.0, %v452
        %v454 = vpop.f32.mrf.mxu0
        %455 = vmatprep.mubr.f32.mxu0 0.0
        %456 = vmatmul.mubr.f32.gmra.mxu0 %v339
        %v457 = vpop.f32.mrf.mxu0
        %v458 = vadd.f32 0.0, %v457
        %v459 = vpop.f32.mrf.mxu0
        %460 = vmatprep.mubr.f32.mxu0 0.0
        %461 = vmatmul.mubr.f32.gmra.mxu0 %v340
        %v462 = vpop.f32.mrf.mxu0
        %v463 = vadd.f32 0.0, %v462
        %v464 = vpop.f32.mrf.mxu0
        %465 = vmatprep.mubr.f32.mxu0 0.0
        %466 = vmatmul.mubr.f32.gmra.mxu0 %v341
        %v467 = vpop.f32.mrf.mxu0
        %v468 = vadd.f32 0.0, %v467
        %v469 = vpop.f32.mrf.mxu0
        %470 = vmatprep.mubr.f32.mxu0 0.0
        %471 = vmatmul.mubr.f32.gmra.mxu0 %v342
        %v472 = vpop.f32.mrf.mxu0
        %v473 = vadd.f32 0.0, %v472
        %v474 = vpop.f32.mrf.mxu0
        %475 = vmatprep.mubr.f32.mxu0 0.0
        %476 = vmatmul.mubr.f32.gmra.mxu0 %v343
        %v477 = vpop.f32.mrf.mxu0
        %v478 = vadd.f32 0.0, %v477
        %v479 = vpop.f32.mrf.mxu0
        %480 = vmatprep.mubr.f32.mxu0 0.0
        %481 = vmatmul.mubr.f32.gmra.mxu0 %v344
        %v482 = vpop.f32.mrf.mxu0
        %v483 = vadd.f32 0.0, %v482
        %v484 = vpop.f32.mrf.mxu0
        %485 = vmatprep.mubr.f32.mxu0 0.0
        %486 = vmatmul.mubr.f32.gmra.mxu0 %v345
        %v487 = vpop.f32.mrf.mxu0
        %v488 = vadd.f32 0.0, %v487
        %v489 = vpop.f32.mrf.mxu0
        %490 = vdwg.mxu0
        %491 = vmatprep.subr.mxu0 0.0
        %492 = vmatpush1.xpose.msra.mxu0 %v297
        %493 = vmatprep.subr.mxu0 0.0
        %494 = vmatpush1.xpose.msra.mxu0 %v296
        %495 = vmatprep.subr.mxu0 0.0
        %496 = vmatpush1.xpose.msra.mxu0 %v295
        %497 = vmatprep.subr.mxu0 0.0
        %498 = vmatpush1.xpose.msra.mxu0 %v294
        %499 = vmatprep.subr.mxu0 0.0
        %500 = vmatpush1.xpose.msra.mxu0 %v293
        %501 = vmatprep.subr.mxu0 0.0
        %502 = vmatpush1.xpose.msra.mxu0 %v292
        %503 = vmatprep.subr.mxu0 0.0
        %504 = vmatpush1.xpose.msra.mxu0 %v291
        %505 = vmatprep.subr.mxu0 0.0
        %506 = vmatpush1.xpose.msra.mxu0 %v290
        %507 = vmatprep.subr.mxu0 0.0
        %508 = vmatpush1.xpose.msra.mxu0 %v289
        %509 = vmatprep.subr.mxu0 0.0
        %510 = vmatpush1.xpose.msra.mxu0 %v288
        %511 = vmatprep.subr.mxu0 0.0
        %512 = vmatpush1.xpose.msra.mxu0 %v287
        %513 = vmatprep.subr.mxu0 0.0
        %514 = vmatpush1.xpose.msra.mxu0 %v286
        %515 = vmatprep.subr.mxu0 0.0
        %516 = vmatpush1.xpose.msra.mxu0 %v285
        %517 = vmatprep.subr.mxu0 0.0
        %518 = vmatpush1.xpose.msra.mxu0 %v284
        %519 = vmatprep.subr.mxu0 0.0
        %520 = vmatpush1.xpose.msra.mxu0 %v283
        %521 = vmatprep.subr.mxu0 0.0
        %522 = vmatpush1.xpose.msra.mxu0 %v282
        %523 = vmatprep.subr.mxu0 0.0
        %524 = vmatpush2.xpose.msra.mxu0 0.0
        %525 = vmatprep.subr.mxu0 0.0
        %526 = vmatpush2.xpose.msra.mxu0 0.0
        %527 = vmatprep.subr.mxu0 0.0
        %528 = vmatpush2.xpose.msra.mxu0 0.0
        %529 = vmatprep.subr.mxu0 0.0
        %530 = vmatpush2.xpose.msra.mxu0 0.0
        %531 = vmatprep.subr.mxu0 0.0
        %532 = vmatpush2.xpose.msra.mxu0 0.0
        %533 = vmatprep.subr.mxu0 0.0
        %534 = vmatpush2.xpose.msra.mxu0 0.0
        %535 = vmatprep.subr.mxu0 0.0
        %536 = vmatpush2.xpose.msra.mxu0 0.0
        %537 = vmatprep.subr.mxu0 0.0
        %538 = vmatpush2.xpose.msra.mxu0 0.0
        %539 = vmatprep.subr.mxu0 0.0
        %540 = vmatpush2.xpose.msra.mxu0 0.0
        %541 = vmatprep.subr.mxu0 0.0
        %542 = vmatpush2.xpose.msra.mxu0 0.0
        %543 = vmatprep.subr.mxu0 0.0
        %544 = vmatpush2.xpose.msra.mxu0 0.0
        %545 = vmatprep.subr.mxu0 0.0
        %546 = vmatpush2.xpose.msra.mxu0 0.0
        %547 = vmatprep.subr.mxu0 0.0
        %548 = vmatpush2.xpose.msra.mxu0 0.0
        %549 = vmatprep.subr.mxu0 0.0
        %550 = vmatpush2.xpose.msra.mxu0 0.0
        %551 = vmatprep.subr.mxu0 0.0
        %552 = vmatpush2.xpose.msra.mxu0 0.0
        %553 = vmatprep.subr.mxu0 0.0
        %554 = vmatpush2.xpose.msra.mxu0 0.0
        %555 = vmatprep.mubr.f32.mxu0 0.0
        %556 = vmatmul.mubr.f32.gmra.mxu0 %v413
        %v557 = vpop.f32.mrf.mxu0
        %v558 = vadd.f32 0.0, %v557
        %v559 = vpop.f32.mrf.mxu0
        %560 = vmatprep.mubr.f32.mxu0 0.0
        %561 = vmatmul.mubr.f32.gmra.mxu0 %v418
        %v562 = vpop.f32.mrf.mxu0
        %v563 = vadd.f32 0.0, %v562
        %v564 = vpop.f32.mrf.mxu0
        %565 = vmatprep.mubr.f32.mxu0 0.0
        %566 = vmatmul.mubr.f32.gmra.mxu0 %v423
        %v567 = vpop.f32.mrf.mxu0
        %v568 = vadd.f32 0.0, %v567
        %v569 = vpop.f32.mrf.mxu0
        %570 = vmatprep.mubr.f32.mxu0 0.0
        %571 = vmatmul.mubr.f32.gmra.mxu0 %v428
        %v572 = vpop.f32.mrf.mxu0
        %v573 = vadd.f32 0.0, %v572
        %v574 = vpop.f32.mrf.mxu0
        %575 = vmatprep.mubr.f32.mxu0 0.0
        %576 = vmatmul.mubr.f32.gmra.mxu0 %v433
        %v577 = vpop.f32.mrf.mxu0
        %v578 = vadd.f32 0.0, %v577
        %v579 = vpop.f32.mrf.mxu0
        %580 = vmatprep.mubr.f32.mxu0 0.0
        %581 = vmatmul.mubr.f32.gmra.mxu0 %v438
        %v582 = vpop.f32.mrf.mxu0
        %v583 = vadd.f32 0.0, %v582
        %v584 = vpop.f32.mrf.mxu0
        %585 = vmatprep.mubr.f32.mxu0 0.0
        %586 = vmatmul.mubr.f32.gmra.mxu0 %v443
        %v587 = vpop.f32.mrf.mxu0
        %v588 = vadd.f32 0.0, %v587
        %v589 = vpop.f32.mrf.mxu0
        %590 = vmatprep.mubr.f32.mxu0 0.0
        %591 = vmatmul.mubr.f32.gmra.mxu0 %v448
        %v592 = vpop.f32.mrf.mxu0
        %v593 = vadd.f32 0.0, %v592
        %v594 = vpop.f32.mrf.mxu0
        %595 = vmatprep.mubr.f32.mxu0 0.0
        %596 = vmatmul.mubr.f32.gmra.mxu0 %v453
        %v597 = vpop.f32.mrf.mxu0
        %v598 = vadd.f32 0.0, %v597
        %v599 = vpop.f32.mrf.mxu0
        %600 = vmatprep.mubr.f32.mxu0 0.0
        %601 = vmatmul.mubr.f32.gmra.mxu0 %v458
        %v602 = vpop.f32.mrf.mxu0
        %v603 = vadd.f32 0.0, %v602
        %v604 = vpop.f32.mrf.mxu0
        %605 = vmatprep.mubr.f32.mxu0 0.0
        %606 = vmatmul.mubr.f32.gmra.mxu0 %v463
        %v607 = vpop.f32.mrf.mxu0
        %v608 = vadd.f32 0.0, %v607
        %v609 = vpop.f32.mrf.mxu0
        %610 = vmatprep.mubr.f32.mxu0 0.0
        %611 = vmatmul.mubr.f32.gmra.mxu0 %v468
        %v612 = vpop.f32.mrf.mxu0
        %v613 = vadd.f32 0.0, %v612
        %v614 = vpop.f32.mrf.mxu0
        %615 = vmatprep.mubr.f32.mxu0 0.0
        %616 = vmatmul.mubr.f32.gmra.mxu0 %v473
        %v617 = vpop.f32.mrf.mxu0
        %v618 = vadd.f32 0.0, %v617
        %v619 = vpop.f32.mrf.mxu0
        %620 = vmatprep.mubr.f32.mxu0 0.0
        %621 = vmatmul.mubr.f32.gmra.mxu0 %v478
        %v622 = vpop.f32.mrf.mxu0
        %v623 = vadd.f32 0.0, %v622
        %v624 = vpop.f32.mrf.mxu0
        %625 = vmatprep.mubr.f32.mxu0 0.0
        %626 = vmatmul.mubr.f32.gmra.mxu0 %v483
        %v627 = vpop.f32.mrf.mxu0
        %v628 = vadd.f32 0.0, %v627
        %v629 = vpop.f32.mrf.mxu0
        %630 = vmatprep.mubr.f32.mxu0 0.0
        %631 = vmatmul.mubr.f32.gmra.mxu0 %v488
        %v632 = vpop.f32.mrf.mxu0
        %v633 = vadd.f32 0.0, %v632
        %v634 = vpop.f32.mrf.mxu0
        %635 = vdwg.mxu0
        %636 = vmatprep.subr.mxu0 0.0
        %637 = vmatpush1.msra.mxu0 %v633
        %638 = vmatprep.subr.mxu0 0.0
        %639 = vmatpush1.msra.mxu0 %v628
        %640 = vmatprep.subr.mxu0 0.0
        %641 = vmatpush1.msra.mxu0 %v623
        %642 = vmatprep.subr.mxu0 0.0
        %643 = vmatpush1.msra.mxu0 %v618
        %644 = vmatprep.subr.mxu0 0.0
        %645 = vmatpush1.msra.mxu0 %v613
        %646 = vmatprep.subr.mxu0 0.0
        %647 = vmatpush1.msra.mxu0 %v608
        %648 = vmatprep.subr.mxu0 0.0
        %649 = vmatpush1.msra.mxu0 %v603
        %650 = vmatprep.subr.mxu0 0.0
        %651 = vmatpush1.msra.mxu0 %v598
        %652 = vmatprep.subr.mxu0 0.0
        %653 = vmatpush1.msra.mxu0 %v593
        %654 = vmatprep.subr.mxu0 0.0
        %655 = vmatpush1.msra.mxu0 %v588
        %656 = vmatprep.subr.mxu0 0.0
        %657 = vmatpush1.msra.mxu0 %v583
        %658 = vmatprep.subr.mxu0 0.0
        %659 = vmatpush1.msra.mxu0 %v578
        %660 = vmatprep.subr.mxu0 0.0
        %661 = vmatpush1.msra.mxu0 %v573
        %662 = vmatprep.subr.mxu0 0.0
        %663 = vmatpush1.msra.mxu0 %v568
        %664 = vmatprep.subr.mxu0 0.0
        %665 = vmatpush1.msra.mxu0 %v563
        %666 = vmatprep.subr.mxu0 0.0
        %667 = vmatpush1.msra.mxu0 %v558
        %668 = vmatprep.subr.mxu0 0.0
        %669 = vmatpush2.msra.mxu0 0.0
        %670 = vmatprep.subr.mxu0 0.0
        %671 = vmatpush2.msra.mxu0 0.0
        %672 = vmatprep.subr.mxu0 0.0
        %673 = vmatpush2.msra.mxu0 0.0
        %674 = vmatprep.subr.mxu0 0.0
        %675 = vmatpush2.msra.mxu0 0.0
        %676 = vmatprep.subr.mxu0 0.0
        %677 = vmatpush2.msra.mxu0 0.0
        %678 = vmatprep.subr.mxu0 0.0
        %679 = vmatpush2.msra.mxu0 0.0
        %680 = vmatprep.subr.mxu0 0.0
        %681 = vmatpush2.msra.mxu0 0.0
        %682 = vmatprep.subr.mxu0 0.0
        %683 = vmatpush2.msra.mxu0 0.0
        %684 = vmatprep.subr.mxu0 0.0
        %685 = vmatpush2.msra.mxu0 0.0
        %686 = vmatprep.subr.mxu0 0.0
        %687 = vmatpush2.msra.mxu0 0.0
        %688 = vmatprep.subr.mxu0 0.0
        %689 = vmatpush2.msra.mxu0 0.0
        %690 = vmatprep.subr.mxu0 0.0
        %691 = vmatpush2.msra.mxu0 0.0
        %692 = vmatprep.subr.mxu0 0.0
        %693 = vmatpush2.msra.mxu0 0.0
        %694 = vmatprep.subr.mxu0 0.0
        %695 = vmatpush2.msra.mxu0 0.0
        %696 = vmatprep.subr.mxu0 0.0
        %697 = vmatpush2.msra.mxu0 0.0
        %698 = vmatprep.subr.mxu0 0.0
        %699 = vmatpush2.msra.mxu0 0.0
        %700 = vmatprep.mubr.f32.mxu0 0.0
        %701 = vmatmul.mubr.f32.gmra.mxu0 %v558
        %v702 = vpop.f32.mrf.mxu0
        %v703 = vadd.f32 0.0, %v702
        %v704 = vpop.f32.mrf.mxu0
        %705 = vmatprep.mubr.f32.mxu0 0.0
        %706 = vmatmul.mubr.f32.gmra.mxu0 %v563
        %v707 = vpop.f32.mrf.mxu0
        %v708 = vadd.f32 0.0, %v707
        %v709 = vpop.f32.mrf.mxu0
        %710 = vmatprep.mubr.f32.mxu0 0.0
        %711 = vmatmul.mubr.f32.gmra.mxu0 %v568
        %v712 = vpop.f32.mrf.mxu0
        %v713 = vadd.f32 0.0, %v712
        %v714 = vpop.f32.mrf.mxu0
        %715 = vmatprep.mubr.f32.mxu0 0.0
        %716 = vmatmul.mubr.f32.gmra.mxu0 %v573
        %v717 = vpop.f32.mrf.mxu0
        %v718 = vadd.f32 0.0, %v717
        %v719 = vpop.f32.mrf.mxu0
        %720 = vmatprep.mubr.f32.mxu0 0.0
        %721 = vmatmul.mubr.f32.gmra.mxu0 %v578
        %v722 = vpop.f32.mrf.mxu0
        %v723 = vadd.f32 0.0, %v722
        %v724 = vpop.f32.mrf.mxu0
        %725 = vmatprep.mubr.f32.mxu0 0.0
        %726 = vmatmul.mubr.f32.gmra.mxu0 %v583
        %v727 = vpop.f32.mrf.mxu0
        %v728 = vadd.f32 0.0, %v727
        %v729 = vpop.f32.mrf.mxu0
        %730 = vmatprep.mubr.f32.mxu0 0.0
        %731 = vmatmul.mubr.f32.gmra.mxu0 %v588
        %v732 = vpop.f32.mrf.mxu0
        %v733 = vadd.f32 0.0, %v732
        %v734 = vpop.f32.mrf.mxu0
        %735 = vmatprep.mubr.f32.mxu0 0.0
        %736 = vmatmul.mubr.f32.gmra.mxu0 %v593
        %v737 = vpop.f32.mrf.mxu0
        %v738 = vadd.f32 0.0, %v737
        %v739 = vpop.f32.mrf.mxu0
        %740 = vmatprep.mubr.f32.mxu0 0.0
        %741 = vmatmul.mubr.f32.gmra.mxu0 %v598
        %v742 = vpop.f32.mrf.mxu0
        %v743 = vadd.f32 0.0, %v742
        %v744 = vpop.f32.mrf.mxu0
        %745 = vmatprep.mubr.f32.mxu0 0.0
        %746 = vmatmul.mubr.f32.gmra.mxu0 %v603
        %v747 = vpop.f32.mrf.mxu0
        %v748 = vadd.f32 0.0, %v747
        %v749 = vpop.f32.mrf.mxu0
        %750 = vmatprep.mubr.f32.mxu0 0.0
        %751 = vmatmul.mubr.f32.gmra.mxu0 %v608
        %v752 = vpop.f32.mrf.mxu0
        %v753 = vadd.f32 0.0, %v752
        %v754 = vpop.f32.mrf.mxu0
        %755 = vmatprep.mubr.f32.mxu0 0.0
        %756 = vmatmul.mubr.f32.gmra.mxu0 %v613
        %v757 = vpop.f32.mrf.mxu0
        %v758 = vadd.f32 0.0, %v757
        %v759 = vpop.f32.mrf.mxu0
        %760 = vmatprep.mubr.f32.mxu0 0.0
        %761 = vmatmul.mubr.f32.gmra.mxu0 %v618
        %v762 = vpop.f32.mrf.mxu0
        %v763 = vadd.f32 0.0, %v762
        %v764 = vpop.f32.mrf.mxu0
        %765 = vmatprep.mubr.f32.mxu0 0.0
        %766 = vmatmul.mubr.f32.gmra.mxu0 %v623
        %v767 = vpop.f32.mrf.mxu0
        %v768 = vadd.f32 0.0, %v767
        %v769 = vpop.f32.mrf.mxu0
        %770 = vmatprep.mubr.f32.mxu0 0.0
        %771 = vmatmul.mubr.f32.gmra.mxu0 %v628
        %v772 = vpop.f32.mrf.mxu0
        %v773 = vadd.f32 0.0, %v772
        %v774 = vpop.f32.mrf.mxu0
        %775 = vmatprep.mubr.f32.mxu0 0.0
        %776 = vmatmul.mubr.f32.gmra.mxu0 %v633
        %v777 = vpop.f32.mrf.mxu0
        %v778 = vadd.f32 0.0, %v777
        %v779 = vpop.f32.mrf.mxu0
        %780 = vdwg.mxu0
        %781 = vst [vmem:[%s265] sm:$0xff] %v703
        %782 = vst [vmem:[%s265 + $0x8] sm:$0xff] %v708
        %783 = vst [vmem:[%s265 + $0x10] sm:$0xff] %v713
        %784 = vst [vmem:[%s265 + $0x18] sm:$0xff] %v718
        %785 = vst [vmem:[%s265 + $0x20] sm:$0xff] %v723
        %786 = vst [vmem:[%s265 + $0x28] sm:$0xff] %v728
        %787 = vst [vmem:[%s265 + $0x30] sm:$0xff] %v733
        %788 = vst [vmem:[%s265 + $0x38] sm:$0xff] %v738
        %789 = vst [vmem:[%s265 + $0x40] sm:$0xff] %v743
        %790 = vst [vmem:[%s265 + $0x48] sm:$0xff] %v748
        %791 = vst [vmem:[%s265 + $0x50] sm:$0xff] %v753
        %792 = vst [vmem:[%s265 + $0x58] sm:$0xff] %v758
        %793 = vst [vmem:[%s265 + $0x60] sm:$0xff] %v763
        %794 = vst [vmem:[%s265 + $0x68] sm:$0xff] %v768
        %795 = vst [vmem:[%s265 + $0x70] sm:$0xff] %v773
        %796 = vst [vmem:[%s265 + $0x78] sm:$0xff] %v778
        %s797 = sand.u32 %s109, 1
        %s798 = scalar_lea.sflag [#allocation4], %s797
        %s799 = sand.u32 %s109, 1
        %s800 = smul.addr %s799, 128
        %s801 = scalar_lea.vmem [#allocation8], %s800
        // Predicated region
        $region45: #{tpu_custom_call.1} parent=31 // pred_check
          %p802 = pneg %p119
        $region46: #{tpu_custom_call.1} parent=31 // pred_check_branch
          %804 = sbr.rel (%p802) target = $region48
        $region47: #{tpu_custom_call.1} parent=31 // pred_region
          %s806 = ssub.s32 2048, 2048
          %807 = vsyncadd %s798, %s806
          %s808 = smul.addr %s23, 16
          %s809 = smul.addr %s808, 128
          %s810 = scalar_lea.hbm %s3, %s809
          %s811 = sshll.u32 %s801, 4
          %s812 = int_to_ptr.vmem [resolvable:$true] %s811
          %817 = dma.vmem_to_hbm [thread:$0]  %s812, 2048, %s810, %s798, 128, 128, 8
        $region48: #{tpu_custom_call.1} parent=31 // pred_fallthru
          _
      $region32: #{tpu_custom_call.1} parent=5 // pred_fallthru
        _
      %p818 = scmp.le.s32.totalorder 2, %s18
      // Predicated region
      $region49: #{tpu_custom_call.1} parent=5 // pred_check
        %p819 = pneg %p818
      $region50: #{tpu_custom_call.1} parent=5 // pred_check_branch
        %821 = sbr.rel (%p819) target = $region52
      $region51: #{tpu_custom_call.1} parent=5 // pred_region
        %s822 = ssub.s32 %s18, 2
        // Predicated region
        $region53: #{tpu_custom_call.1} parent=51 // pred_check
          %p823 = pneg %p125
        $region54: #{tpu_custom_call.1} parent=51 // pred_check_branch
          %825 = sbr.rel (%p823) target = $region56
        $region55: #{tpu_custom_call.1} parent=51 // pred_region
          %s826 = sand.u32 %s110, 1
          %s827 = scalar_lea.sflag [#allocation4], %s826
          %s828 = sand.u32 %s110, 1
          %s829 = smul.addr %s828, 128
          %s830 = scalar_lea.vmem [#allocation8], %s829
          %831 = dma.done %s827, 2048
        $region56: #{tpu_custom_call.1} parent=51 // pred_fallthru
          _
      $region52: #{tpu_custom_call.1} parent=5 // pred_fallthru
        _
    $region6: #{tpu_custom_call.1} parent=1 // loop_footer
      %s22 = sadd.s32 1, %s18
    $region7: #{tpu_custom_call.1} parent=1 // loop_footer_branch
      %17 = sbr.rel target = $region3
    $region8: #{tpu_custom_call.1} parent=1 // loop_exit
      _
    %832 = vsyncpa [#allocation3], 1
    %s833 = scalar_lea.sflag [#allocation3], 1
    %834 = vsyncpa %s833, 1
    %835 = vsyncpa [#allocation6], 1
    %s836 = scalar_lea.sflag [#allocation6], 1
    %837 = vsyncpa %s836, 1
    %838 = vsyncpa [#allocation4], 1
    %s839 = scalar_lea.sflag [#allocation4], 1
    %840 = vsyncpa %s839, 1

</llo_original>
